<compile_context>
chip_gen: v7x
topology: tpu7x:2x2x1
jax: 0.10.0
libtpu: 0.0.40
codegen_flags: <defaults>
</compile_context>

<pallas_src>
import functools

import jax
import jax.numpy as jnp
from jax.experimental import pallas as pl
from jax.experimental.pallas import tpu as pltpu


_MIN_GRID_STEPS = 4            # >= 2 grid steps per TensorCore on v7x megacore
_MIN_PALLAS_ELEMENTS = 1 << 15  # below this, XLA's fused ops win; use fallback
_MAX_TILE_ROWS = 2048           # diminishing returns past ~1-2K rows per tile


def _num_slots(operations, n_feats):
    n = 0
    for op in operations:
        if op == "concat":
            n += n_feats
        elif op in ("add", "multiply"):
            n += 1
        else:
            raise ValueError(f"unknown operation: {op}")
    return n


def _reactor_kernel(*refs, operations, n_feats, d):
    """refs = (feat_ref_0, ..., feat_ref_{n-1}, out_ref).

    Each input ref is a (TB, D) VMEM tile; out_ref is (TB, n_slots*D).
    One lane-dense store per output slot (D % 128 == 0 on this path).
    """
    in_refs = refs[:n_feats]
    out_ref = refs[n_feats]

    loaded = {}

    def load(i):
        if i not in loaded:
            loaded[i] = in_refs[i][...]
        return loaded[i]

    # Walk the op list in order, tracking the evolving feats[0] state
    # (PyTorch's in-place `feat *= f`), and record one entry per output slot.
    feat0 = None  # None => still the raw (unmutated) input

    def cur_feat0():
        return load(0) if feat0 is None else feat0

    slots = []  # entries: ("feat", i) | ("final0", None) | ("val", value)
    for op in operations:
        if op == "concat":
            # Slot 0 aliases feats[0]; torch.cat happens after the loop, so
            # it sees the FINAL (possibly multiplied) feats[0].
            slots.append(("final0", None))
            for i in range(1, n_feats):
                slots.append(("feat", i))
        elif op == "add":
            s = cur_feat0()                 # snapshot at op time
            for i in range(1, n_feats):
                s = s + load(i)
            slots.append(("val", s))
        elif op == "multiply":
            p = cur_feat0()
            for i in range(1, n_feats):
                p = p * load(i)
            feat0 = p                        # in-place mutation of feats[0]
            slots.append(("final0", None))   # aliases final feats[0]

    final0 = cur_feat0()

    # Per-slot stores: slot offsets s*D are multiples of 128 -> unmasked,
    # full-lane vst streams, no concatenated VMEM temporary.
    for s, (kind, payload) in enumerate(slots):
        lo = s * d
        if kind == "feat":
            out_ref[:, lo:lo + d] = load(payload)
        elif kind == "val":
            out_ref[:, lo:lo + d] = payload
        else:  # "final0"
            out_ref[:, lo:lo + d] = final0


def _round_up(x, m):
    return ((x + m - 1) // m) * m


def _vmem_budget():
    """(data_budget_bytes, vmem_limit_bytes_or_None), generation-aware."""
    cap = None
    try:
        cap = getattr(pltpu.get_tpu_info(), "vmem_capacity_bytes", None)
    except Exception:
        cap = None
    if cap is not None and cap >= 100 * 1024 * 1024:
        # v5e / v6e: 128 MiB physical VMEM -> use the headroom.
        return 48 * 1024 * 1024, 96 * 1024 * 1024
    # v7x (64 MiB physical / 32 MiB scoped) or unknown: stay conservative and
    # leave the scoped default limit untouched (Mosaic scratch headroom).
    return 20 * 1024 * 1024, None


def _choose_batch_tile(b, d, n_feats, n_slots, dtype, budget):
    """Largest batch tile that (a) fits the double-buffered VMEM budget and
    (b) still leaves >= _MIN_GRID_STEPS grid steps for pipelining / megacore."""
    itemsize = jnp.dtype(dtype).itemsize
    row_gran = 16 if itemsize <= 2 else 8  # bf16 packs 2 rows per sublane
    # Per grid step Pallas double-buffers every input tile (TB, D) and the
    # output tile (TB, n_slots*D):  2 * (n_feats + n_slots) * TB * D bytes.
    bytes_per_row = 2 * (n_feats + n_slots) * d * itemsize
    tb = budget // max(bytes_per_row, 1)
    tb = min(tb, _MAX_TILE_ROWS)
    # Cap so the grid has at least _MIN_GRID_STEPS steps (don't collapse to
    # grid=(1,): that idles one v7x TensorCore and kills DMA/compute overlap).
    tb = min(tb, _round_up(pl.cdiv(b, _MIN_GRID_STEPS), row_gran))
    tb = max(tb, row_gran)
    if tb >= b:
        return b  # batch too small to split; whole-array block is legal
    return max((tb // row_gran) * row_gran, row_gran)


def basic_reactor(feats, operations=("concat", "add", "multiply"), tb=None,
                  force_pallas=False):
    """Pallas implementation of BasicReactor.forward(**kwargs).

    Args:
      feats: list of [B, D] arrays (same shape/dtype), in kwargs order.
      operations: tuple of ops from {'concat', 'add', 'multiply'}.
      tb: optional batch-tile override (rounded to 8 rows f32 / 16 rows bf16).
      force_pallas: bypass the size gate (the D % 128 gate is kept hard).
    Returns:
      [B, n_slots * D] fused tensor (concat along dim=1).
    """
    feats = list(feats)
    n_feats = len(feats)
    assert n_feats >= 1, "need at least one feature"
    b, d = feats[0].shape
    dtype = feats[0].dtype
    for f in feats:
        assert f.shape == (b, d) and f.dtype == dtype, "all feats must match"

    n_slots = _num_slots(operations, n_feats)
    out_d = n_slots * d

    # Gate the Pallas path: this kernel is a pure HBM streamer and only wins
    # when rows are lane-dense (D % 128 == 0) and there is enough data to
    # stream; otherwise XLA's fused concat/add/mul is the faster choice.
    too_small = (b * d * n_feats) < _MIN_PALLAS_ELEMENTS
    if (d % 128 != 0) or (too_small and not force_pallas):
        return basic_reactor_reference(feats, operations)

    itemsize = jnp.dtype(dtype).itemsize
    row_gran = 16 if itemsize <= 2 else 8

    budget, vmem_limit = _vmem_budget()
    if tb is None:
        tb = _choose_batch_tile(b, d, n_feats, n_slots, dtype, budget)
    else:
        tb = int(tb)
        if tb <= 0 or tb >= b:
            tb = b
        else:
            # Round a partial-batch tile down to the sublane granularity so
            # the BlockSpec satisfies the (8,128) divisibility rule.
            tb = max((tb // row_gran) * row_gran, row_gran)
            if tb >= b:
                tb = b

    grid = (pl.cdiv(b, tb),)

    kernel = functools.partial(
        _reactor_kernel, operations=tuple(operations), n_feats=n_feats, d=d
    )

    in_specs = [pl.BlockSpec((tb, d), lambda i: (i, 0)) for _ in range(n_feats)]
    out_spec = pl.BlockSpec((tb, out_d), lambda i: (i, 0))

    cp_kwargs = dict(dimension_semantics=("parallel",))
    if vmem_limit is not None:
        cp_kwargs["vmem_limit_bytes"] = vmem_limit

    return pl.pallas_call(
        kernel,
        out_shape=jax.ShapeDtypeStruct((b, out_d), dtype),
        grid=grid,
        in_specs=in_specs,
        out_specs=out_spec,
        compiler_params=pltpu.CompilerParams(**cp_kwargs),
    )(*feats)


def basic_reactor_reference(feats, operations):
    """Pure-JAX reference reproducing the PyTorch semantics (incl. aliasing)."""
    feats = list(feats)
    mm = []
    for op in operations:
        if op == "concat":
            for i in range(len(feats)):
                mm.append(("ref", i))
        elif op == "add":
            s = feats[0]
            for f in feats[1:]:
                s = s + f
            mm.append(("val", s))
        elif op == "multiply":
            p = feats[0]
            for f in feats[1:]:
                p = p * f
            feats[0] = p
            mm.append(("ref", 0))
        else:
            raise ValueError(f"unknown operation: {op}")
    cols = [feats[v] if kind == "ref" else v for kind, v in mm]
    return jnp.concatenate(cols, axis=1)


if __name__ == "__main__":
    operations = ("concat", "add", "multiply")

    # --- Tiny shape consistent with forward(imgs, sents, audios); D=32 is
    #     below the lane-dense gate, so this exercises the automatic fallback.
    key = jax.random.PRNGKey(0)
    B, D = 2, 32
    k_img, k_sent, k_aud = jax.random.split(key, 3)
    imgs = jax.random.normal(k_img, (B, D), dtype=jnp.float32)
    sents = jax.random.normal(k_sent, (B, D), dtype=jnp.float32)
    audios = jax.random.normal(k_aud, (B, D), dtype=jnp.float32)
    feats = [imgs, sents, audios]  # kwargs order: imgs, sents, audios
    out = jax.block_until_ready(basic_reactor(feats, operations))
    ref = basic_reactor_reference(feats, operations)
    assert out.shape == (B, _num_slots(operations, len(feats)) * D), out.shape
    assert jnp.allclose(out, ref, atol=1e-6, rtol=1e-6), "small-shape mismatch"

    # --- Pallas path: lane-dense D, batch auto-tiled into >= 4 grid steps ---
    B2, D2 = 256, 128
    k1, k2, k3 = jax.random.split(jax.random.PRNGKey(0), 3)
    feats2 = [jax.random.normal(k, (B2, D2), dtype=jnp.float32) for k in (k1, k2, k3)]
    out2 = jax.block_until_ready(
        basic_reactor(feats2, operations, force_pallas=True))
    ref2 = basic_reactor_reference(feats2, operations)
    assert out2.shape == ref2.shape, out2.shape
    assert jnp.allclose(out2, ref2, atol=1e-6, rtol=1e-6), "pallas path mismatch"

    # --- bf16 path with a user-supplied tile (70 rounds down to 64, bf16
    #     row granularity is 16), 4 grid steps of 64 rows each ---
    feats3 = [f.astype(jnp.bfloat16) for f in feats2]
    out3 = jax.block_until_ready(
        basic_reactor(feats3, operations, tb=70, force_pallas=True))
    ref3 = basic_reactor_reference(feats3, operations)
    assert out3.shape == ref3.shape, out3.shape
    assert jnp.allclose(out3.astype(jnp.float32), ref3.astype(jnp.float32),
                        atol=1e-2, rtol=1e-2), "bf16 tiled mismatch"

    print("KERNEL_OK")
</pallas_src>

<mosaic_0001>
module attributes {stable_mosaic.version = 11 : i64} {
  func.func @_reactor_kernel(%arg0: i32, %arg1: memref<64x128xf32, #tpu.memory_space<vmem>>, %arg2: memref<64x128xf32, #tpu.memory_space<vmem>>, %arg3: memref<64x128xf32, #tpu.memory_space<vmem>>, %arg4: memref<64x640xf32, #tpu.memory_space<vmem>>) attributes {dimension_semantics = [#tpu.dimension_semantics<parallel>], iteration_bounds = array<i64: 4>, scalar_prefetch = 0 : i64, scratch_operands = 0 : i64, tpu.core_type = #tpu.core_type<tc>, window_params = [{transform_indices = @transform_0, window_bounds = array<i64: 64, 128>}, {transform_indices = @transform_1, window_bounds = array<i64: 64, 128>}, {transform_indices = @transform_2, window_bounds = array<i64: 64, 128>}, {transform_indices = @transform_3, window_bounds = array<i64: 64, 640>}]} {
    %c0 = arith.constant 0 : index
    %c0_0 = arith.constant 0 : index
    %0 = vector.load %arg1[%c0, %c0_0] : memref<64x128xf32, #tpu.memory_space<vmem>>, vector<64x128xf32>
    %c0_1 = arith.constant 0 : index
    %c0_2 = arith.constant 0 : index
    %1 = vector.load %arg2[%c0_1, %c0_2] : memref<64x128xf32, #tpu.memory_space<vmem>>, vector<64x128xf32>
    %2 = arith.addf %0, %1 : vector<64x128xf32>
    %c0_3 = arith.constant 0 : index
    %c0_4 = arith.constant 0 : index
    %3 = vector.load %arg3[%c0_3, %c0_4] : memref<64x128xf32, #tpu.memory_space<vmem>>, vector<64x128xf32>
    %4 = arith.addf %2, %3 : vector<64x128xf32>
    %5 = arith.mulf %0, %1 : vector<64x128xf32>
    %6 = arith.mulf %5, %3 : vector<64x128xf32>
    %c0_5 = arith.constant 0 : index
    %c0_6 = arith.constant 0 : index
    %7 = vector.load %arg4[%c0_5, %c0_6] : memref<64x640xf32, #tpu.memory_space<vmem>>, vector<64x128xf32>
    tpu.vector_store %arg4[%c0_5, %c0_6], %6 {strides = array<i32>} : memref<64x640xf32, #tpu.memory_space<vmem>>, vector<64x128xf32>,
    %c0_7 = arith.constant 0 : index
    %c128 = arith.constant 128 : index
    %8 = vector.load %arg4[%c0_7, %c128] : memref<64x640xf32, #tpu.memory_space<vmem>>, vector<64x128xf32>
    tpu.vector_store %arg4[%c0_7, %c128], %1 {strides = array<i32>} : memref<64x640xf32, #tpu.memory_space<vmem>>, vector<64x128xf32>,
    %c0_8 = arith.constant 0 : index
    %c256 = arith.constant 256 : index
    %9 = vector.load %arg4[%c0_8, %c256] : memref<64x640xf32, #tpu.memory_space<vmem>>, vector<64x128xf32>
    tpu.vector_store %arg4[%c0_8, %c256], %3 {strides = array<i32>} : memref<64x640xf32, #tpu.memory_space<vmem>>, vector<64x128xf32>,
    %c0_9 = arith.constant 0 : index
    %c384 = arith.constant 384 : index
    %10 = vector.load %arg4[%c0_9, %c384] : memref<64x640xf32, #tpu.memory_space<vmem>>, vector<64x128xf32>
    tpu.vector_store %arg4[%c0_9, %c384], %4 {strides = array<i32>} : memref<64x640xf32, #tpu.memory_space<vmem>>, vector<64x128xf32>,
    %c0_10 = arith.constant 0 : index
    %c512 = arith.constant 512 : index
    %11 = vector.load %arg4[%c0_10, %c512] : memref<64x640xf32, #tpu.memory_space<vmem>>, vector<64x128xf32>
    tpu.vector_store %arg4[%c0_10, %c512], %6 {strides = array<i32>} : memref<64x640xf32, #tpu.memory_space<vmem>>, vector<64x128xf32>,
    return
  }
  func.func @transform_0(%arg0: i32) -> (i32, i32) {
    %c0_i32 = arith.constant 0 : i32
    %c0_i32_0 = arith.constant 0 : i32
    return %arg0, %c0_i32 : i32, i32
  }
  func.func @transform_1(%arg0: i32) -> (i32, i32) {
    %c0_i32 = arith.constant 0 : i32
    %c0_i32_0 = arith.constant 0 : i32
    return %arg0, %c0_i32 : i32, i32
  }
  func.func @transform_2(%arg0: i32) -> (i32, i32) {
    %c0_i32 = arith.constant 0 : i32
    %c0_i32_0 = arith.constant 0 : i32
    return %arg0, %c0_i32 : i32, i32
  }
  func.func @transform_3(%arg0: i32) -> (i32, i32) {
    %c0_i32 = arith.constant 0 : i32
    %c0_i32_0 = arith.constant 0 : i32
    return %arg0, %c0_i32 : i32, i32
  }
}

</mosaic_0001>

<llo_original>
// kernel: tpu_custom_call.1
$region0: #{tpu_custom_call.1}
  #allocation0 [shape = 'u32[]', space=smem, size = 0x4, offset = 0x4, fixed_abs, tag = 'smem constant byte address 0x4 - core index']
  #allocation1 [shape = 'u32[144,128]{1,0:T(1,128)}', space=vmem, size = 0x12000, scoped, tag = 'internal scratch']
  %s0 = inlined_call_operand.hbm [shape: f32[256,128], index: 0, kind: input, shape index: {}]
  %s1 = inlined_call_operand.hbm [shape: f32[256,128], index: 1, kind: input, shape index: {}]
  %s2 = inlined_call_operand.hbm [shape: f32[256,128], index: 2, kind: input, shape index: {}]
  %s3 = inlined_call_operand.hbm [shape: f32[256,640], index: 3, kind: output, shape index: {}]
  %s4 = sld [smem:[#allocation0]]
  $region57: #{tpu_custom_call.1} parent=0
    _
  %s6 = ssub.s32 1, %s4
  %s7 = scalar_select 0, %s6, %s4
  $region1: #{tpu_custom_call.1} parent=0
    #allocation2 [shape = 'u8[65536]{0}', space=vmem, size = 0x10000, scoped, tag = 'input window, operand 0']
    #allocation3 [shape = 's32[2]{0}', space=sflag, size = 0x8, scoped, tag = 'scoped memory for tpu_custom_call.1']
    #allocation4 [shape = 's32[2]{0}', space=sflag, size = 0x8, scoped, tag = 'scoped memory for tpu_custom_call.1']
    #allocation5 [shape = 'u8[65536]{0}', space=vmem, size = 0x10000, scoped, tag = 'input window, operand 1']
    #allocation6 [shape = 's32[2]{0}', space=sflag, size = 0x8, scoped, tag = 'scoped memory for tpu_custom_call.1']
    #allocation7 [shape = 'u8[65536]{0}', space=vmem, size = 0x10000, scoped, tag = 'input window, operand 2']
    #allocation8 [shape = 'u8[327680]{0}', space=vmem, size = 0x50000, scoped, tag = 'output window, operand 0']
    %8 = vsyncpa [#allocation3], 0
    %s9 = scalar_lea.sflag [#allocation3], 1
    %10 = vsyncpa %s9, 0
    %11 = vsyncpa [#allocation6], 0
    %s12 = scalar_lea.sflag [#allocation6], 1
    %13 = vsyncpa %s12, 0
    %14 = vsyncpa [#allocation4], 0
    %s15 = scalar_lea.sflag [#allocation4], 1
    %16 = vsyncpa %s15, 0
    loop: start=0, step=1, limit=6
    $region2: #{tpu_custom_call.1} parent=1 // loop_pre_header
      _
    $region3: #{tpu_custom_call.1} parent=1 // loop_header
      %s18 = sphi 0, %s22
      %p19 = scmp.ge.s32.totalorder %s18, 6
      %s28 = sphi 0, %s30
      %s31 = sphi 0, %s28
      %s32 = sphi 0, %s31
      %s48 = sphi 0, %s32
      %s54 = sphi 0, %s56
      %s57 = sphi 0, %s54
      %s58 = sphi 0, %s57
      %s74 = sphi 0, %s58
      %s80 = sphi 0, %s82
      %s83 = sphi 0, %s80
      %s84 = sphi 0, %s83
      %s100 = sphi 0, %s84
      %s106 = sphi 0, %s108
      %s109 = sphi 0, %s106
      %s110 = sphi 0, %s109
      %s126 = sphi 0, %s110
    $region4: #{tpu_custom_call.1} parent=1 // loop_header_branch
      %21 = sbr.rel (%p19) target = $region8
    $region5: #{tpu_custom_call.1} parent=1 // loop_body
      %s23 = ssub.s32 %s18, 1
      %s24 = ssub.s32 %s18, 2
      %s25 = sadd.s32 %s18, 1
      %s26 = ssub.s32 %s18, %s25
      %p27 = scmp.eq.s32.totalorder %s26, 0
      %s29 = sadd.s32 %s28, 1
      %s30 = scalar_select %p27, %s28, %s29
      %p33 = pneg %p27
      %p34 = scmp.eq.s32.totalorder %s18, 3
      %p35 = por %p33, %p34
      %p36 = scmp.ne.s32.totalorder %s28, %s31
      %p37 = scmp.eq.s32.totalorder %s18, 0
      %p38 = por %p36, %p37
      %p39 = scmp.ne.s32.totalorder %s28, %s31
      %p40 = scmp.eq.s32.totalorder %s23, 3
      %p41 = por %p39, %p40
      %p42 = scmp.ne.s32.totalorder %s31, %s32
      %p43 = scmp.eq.s32.totalorder %s23, 0
      %p44 = por %p42, %p43
      %p45 = scmp.ne.s32.totalorder %s31, %s32
      %p46 = scmp.eq.s32.totalorder %s24, 3
      %p47 = por %p45, %p46
      %p49 = scmp.ne.s32.totalorder %s32, %s48
      %p50 = scmp.eq.s32.totalorder %s24, 0
      %p51 = por %p49, %p50
      %s52 = ssub.s32 %s18, %s25
      %p53 = scmp.eq.s32.totalorder %s52, 0
      %s55 = sadd.s32 %s54, 1
      %s56 = scalar_select %p53, %s54, %s55
      %p59 = pneg %p53
      %p60 = scmp.eq.s32.totalorder %s18, 3
      %p61 = por %p59, %p60
      %p62 = scmp.ne.s32.totalorder %s54, %s57
      %p63 = scmp.eq.s32.totalorder %s18, 0
      %p64 = por %p62, %p63
      %p65 = scmp.ne.s32.totalorder %s54, %s57
      %p66 = scmp.eq.s32.totalorder %s23, 3
      %p67 = por %p65, %p66
      %p68 = scmp.ne.s32.totalorder %s57, %s58
      %p69 = scmp.eq.s32.totalorder %s23, 0
      %p70 = por %p68, %p69
      %p71 = scmp.ne.s32.totalorder %s57, %s58
      %p72 = scmp.eq.s32.totalorder %s24, 3
      %p73 = por %p71, %p72
      %p75 = scmp.ne.s32.totalorder %s58, %s74
      %p76 = scmp.eq.s32.totalorder %s24, 0
      %p77 = por %p75, %p76
      %s78 = ssub.s32 %s18, %s25
      %p79 = scmp.eq.s32.totalorder %s78, 0
      %s81 = sadd.s32 %s80, 1
      %s82 = scalar_select %p79, %s80, %s81
      %p85 = pneg %p79
      %p86 = scmp.eq.s32.totalorder %s18, 3
      %p87 = por %p85, %p86
      %p88 = scmp.ne.s32.totalorder %s80, %s83
      %p89 = scmp.eq.s32.totalorder %s18, 0
      %p90 = por %p88, %p89
      %p91 = scmp.ne.s32.totalorder %s80, %s83
      %p92 = scmp.eq.s32.totalorder %s23, 3
      %p93 = por %p91, %p92
      %p94 = scmp.ne.s32.totalorder %s83, %s84
      %p95 = scmp.eq.s32.totalorder %s23, 0
      %p96 = por %p94, %p95
      %p97 = scmp.ne.s32.totalorder %s83, %s84
      %p98 = scmp.eq.s32.totalorder %s24, 3
      %p99 = por %p97, %p98
      %p101 = scmp.ne.s32.totalorder %s84, %s100
      %p102 = scmp.eq.s32.totalorder %s24, 0
      %p103 = por %p101, %p102
      %s104 = ssub.s32 %s18, %s25
      %p105 = scmp.eq.s32.totalorder %s104, 0
      %s107 = sadd.s32 %s106, 1
      %s108 = scalar_select %p105, %s106, %s107
      %p111 = pneg %p105
      %p112 = scmp.eq.s32.totalorder %s18, 3
      %p113 = por %p111, %p112
      %p114 = scmp.ne.s32.totalorder %s106, %s109
      %p115 = scmp.eq.s32.totalorder %s18, 0
      %p116 = por %p114, %p115
      %p117 = scmp.ne.s32.totalorder %s106, %s109
      %p118 = scmp.eq.s32.totalorder %s23, 3
      %p119 = por %p117, %p118
      %p120 = scmp.ne.s32.totalorder %s109, %s110
      %p121 = scmp.eq.s32.totalorder %s23, 0
      %p122 = por %p120, %p121
      %p123 = scmp.ne.s32.totalorder %s109, %s110
      %p124 = scmp.eq.s32.totalorder %s24, 3
      %p125 = por %p123, %p124
      %p127 = scmp.ne.s32.totalorder %s110, %s126
      %p128 = scmp.eq.s32.totalorder %s24, 0
      %p129 = por %p127, %p128
      %p130 = scmp.le.s32.totalorder 1, %s18
      %p131 = scmp.lt.s32.totalorder %s18, 5
      %p132 = pnand %p130, %p131
      %p133 = pneg %p132
      // Predicated region
      $region9: #{tpu_custom_call.1} parent=5 // pred_check
        _
      $region10: #{tpu_custom_call.1} parent=5 // pred_check_branch
        %135 = sbr.rel (%p132) target = $region12
      $region11: #{tpu_custom_call.1} parent=5 // pred_region
        %s136 = ssub.s32 %s18, 1
      $region12: #{tpu_custom_call.1} parent=5 // pred_fallthru
        _
      %p137 = scmp.lt.s32.totalorder %s18, 4
      // Predicated region
      $region13: #{tpu_custom_call.1} parent=5 // pred_check
        %p138 = pneg %p137
      $region14: #{tpu_custom_call.1} parent=5 // pred_check_branch
        %140 = sbr.rel (%p138) target = $region16
      $region15: #{tpu_custom_call.1} parent=5 // pred_region
        // Predicated region
        $region17: #{tpu_custom_call.1} parent=15 // pred_check
          %p141 = pneg %p38
        $region18: #{tpu_custom_call.1} parent=15 // pred_check_branch
          %143 = sbr.rel (%p141) target = $region20
        $region19: #{tpu_custom_call.1} parent=15 // pred_region
          %s144 = sand.u32 %s28, 1
          %s145 = scalar_lea.sflag [#allocation3], %s144
          %s146 = sand.u32 %s28, 1
          %s147 = smul.addr %s146, 64
          %s148 = scalar_lea.vmem [#allocation2], %s147
          %s149 = smul.u32 8, %s18
          %s151 = ssub.s32 1024, 1024
          %152 = vsyncadd %s145, %s151
          %s153 = smul.addr %s149, 128
          %s154 = scalar_lea.hbm %s0, %s153
          %s155 = sshll.u32 %s148, 4
          %s156 = int_to_ptr.vmem [resolvable:$true] %s155
          %161 = dma.hbm_to_vmem [thread:$0]  %s154, 1024, %s156, %s145, 128, 128, 8
        $region20: #{tpu_custom_call.1} parent=15 // pred_fallthru
          _
        // Predicated region
        $region21: #{tpu_custom_call.1} parent=15 // pred_check
          %p162 = pneg %p64
        $region22: #{tpu_custom_call.1} parent=15 // pred_check_branch
          %164 = sbr.rel (%p162) target = $region24
        $region23: #{tpu_custom_call.1} parent=15 // pred_region
          %s165 = sand.u32 %s18, 1
          %s166 = scalar_lea.sflag [#allocation6], %s165
          %s167 = sand.u32 %s54, 1
          %s168 = smul.addr %s167, 64
          %s169 = scalar_lea.vmem [#allocation5], %s168
          %s170 = smul.u32 8, %s18
          %s172 = ssub.s32 1024, 1024
          %173 = vsyncadd %s166, %s172
          %s174 = smul.addr %s170, 128
          %s175 = scalar_lea.hbm %s1, %s174
          %s176 = sshll.u32 %s169, 4
          %s177 = int_to_ptr.vmem [resolvable:$true] %s176
          %182 = dma.hbm_to_vmem [thread:$0]  %s175, 1024, %s177, %s166, 128, 128, 8
        $region24: #{tpu_custom_call.1} parent=15 // pred_fallthru
          _
        // Predicated region
        $region25: #{tpu_custom_call.1} parent=15 // pred_check
          %p183 = pneg %p90
        $region26: #{tpu_custom_call.1} parent=15 // pred_check_branch
          %185 = sbr.rel (%p183) target = $region28
        $region27: #{tpu_custom_call.1} parent=15 // pred_region
          %s186 = sand.u32 %s18, 1
          %s187 = scalar_lea.sflag [#allocation6], %s186
          %s188 = sand.u32 %s80, 1
          %s189 = smul.addr %s188, 64
          %s190 = scalar_lea.vmem [#allocation7], %s189
          %s191 = smul.u32 8, %s18
          %s193 = ssub.s32 1024, 1024
          %194 = vsyncadd %s187, %s193
          %s195 = smul.addr %s191, 128
          %s196 = scalar_lea.hbm %s2, %s195
          %s197 = sshll.u32 %s190, 4
          %s198 = int_to_ptr.vmem [resolvable:$true] %s197
          %203 = dma.hbm_to_vmem [thread:$0]  %s196, 1024, %s198, %s187, 128, 128, 8
        $region28: #{tpu_custom_call.1} parent=15 // pred_fallthru
          _
      $region16: #{tpu_custom_call.1} parent=5 // pred_fallthru
        _
      %p204 = scmp.le.s32.totalorder 1, %s18
      %p205 = scmp.lt.s32.totalorder %s18, 5
      %p206 = pnand %p204, %p205
      %p207 = pneg %p206
      // Predicated region
      $region29: #{tpu_custom_call.1} parent=5 // pred_check
        _
      $region30: #{tpu_custom_call.1} parent=5 // pred_check_branch
        %209 = sbr.rel (%p206) target = $region32
      $region31: #{tpu_custom_call.1} parent=5 // pred_region
        %s210 = ssub.s32 %s18, 1
        %s211 = sand.u32 %s31, 1
        %s212 = scalar_lea.sflag [#allocation3], %s211
        %s213 = sand.u32 %s31, 1
        %s214 = smul.addr %s213, 64
        %s215 = scalar_lea.vmem [#allocation2], %s214
        // Predicated region
        $region33: #{tpu_custom_call.1} parent=31 // pred_check
          %p216 = pneg %p44
        $region34: #{tpu_custom_call.1} parent=31 // pred_check_branch
          %218 = sbr.rel (%p216) target = $region36
        $region35: #{tpu_custom_call.1} parent=31 // pred_region
          %219 = dma.done %s212, 1024
        $region36: #{tpu_custom_call.1} parent=31 // pred_fallthru
          _
        %s220 = sand.u32 %s23, 1
        %s221 = scalar_lea.sflag [#allocation6], %s220
        %s222 = sand.u32 %s57, 1
        %s223 = smul.addr %s222, 64
        %s224 = scalar_lea.vmem [#allocation5], %s223
        // Predicated region
        $region37: #{tpu_custom_call.1} parent=31 // pred_check
          %p225 = pneg %p70
        $region38: #{tpu_custom_call.1} parent=31 // pred_check_branch
          %227 = sbr.rel (%p225) target = $region40
        $region39: #{tpu_custom_call.1} parent=31 // pred_region
          %228 = dma.done %s221, 1024
        $region40: #{tpu_custom_call.1} parent=31 // pred_fallthru
          _
        %s229 = sand.u32 %s23, 1
        %s230 = scalar_lea.sflag [#allocation6], %s229
        %s231 = sand.u32 %s83, 1
        %s232 = smul.addr %s231, 64
        %s233 = scalar_lea.vmem [#allocation7], %s232
        // Predicated region
        $region41: #{tpu_custom_call.1} parent=31 // pred_check
          %p234 = pneg %p96
        $region42: #{tpu_custom_call.1} parent=31 // pred_check_branch
          %236 = sbr.rel (%p234) target = $region44
        $region43: #{tpu_custom_call.1} parent=31 // pred_region
          %237 = dma.done %s230, 1024
        $region44: #{tpu_custom_call.1} parent=31 // pred_fallthru
          _
        %s238 = sand.u32 %s31, 1
        %s239 = scalar_lea.sflag [#allocation3], %s238
        %s240 = sand.u32 %s31, 1
        %s241 = smul.addr %s240, 64
        %s242 = scalar_lea.vmem [#allocation2], %s241
        %p243 = pneg %p44
        %p244 = pneg %p41
        %s245 = sand.u32 %s23, 1
        %s246 = scalar_lea.sflag [#allocation6], %s245
        %s247 = sand.u32 %s57, 1
        %s248 = smul.addr %s247, 64
        %s249 = scalar_lea.vmem [#allocation5], %s248
        %p250 = pneg %p70
        %p251 = pneg %p67
        %s252 = sand.u32 %s23, 1
        %s253 = scalar_lea.sflag [#allocation6], %s252
        %s254 = sand.u32 %s83, 1
        %s255 = smul.addr %s254, 64
        %s256 = scalar_lea.vmem [#allocation7], %s255
        %p257 = pneg %p96
        %p258 = pneg %p93
        %p259 = pneg %p122
        %p260 = pneg %p119
        %s261 = sand.u32 %s109, 1
        %s262 = scalar_lea.sflag [#allocation4], %s261
        %s263 = sand.u32 %s109, 1
        %s264 = smul.addr %s263, 320
        %s265 = scalar_lea.vmem [#allocation8], %s264
        %s266 = smul.u32 8, %s23
        %s267 = smul.u32 8, %s23
        %s268 = smul.u32 8, %s23
        %s269 = smul.u32 8, %s23
        %v270 = vld [vmem:[%s215] sm:$0xff]
        %v271 = vld [vmem:[%s215 + $0x8] sm:$0xff]
        %v272 = vld [vmem:[%s215 + $0x10] sm:$0xff]
        %v273 = vld [vmem:[%s215 + $0x18] sm:$0xff]
        %v274 = vld [vmem:[%s215 + $0x20] sm:$0xff]
        %v275 = vld [vmem:[%s215 + $0x28] sm:$0xff]
        %v276 = vld [vmem:[%s215 + $0x30] sm:$0xff]
        %v277 = vld [vmem:[%s215 + $0x38] sm:$0xff]
        %v278 = vld [vmem:[%s224] sm:$0xff]
        %v279 = vld [vmem:[%s224 + $0x8] sm:$0xff]
        %v280 = vld [vmem:[%s224 + $0x10] sm:$0xff]
        %v281 = vld [vmem:[%s224 + $0x18] sm:$0xff]
        %v282 = vld [vmem:[%s224 + $0x20] sm:$0xff]
        %v283 = vld [vmem:[%s224 + $0x28] sm:$0xff]
        %v284 = vld [vmem:[%s224 + $0x30] sm:$0xff]
        %v285 = vld [vmem:[%s224 + $0x38] sm:$0xff]
        %v286 = vadd.f32 %v270, %v278
        %v287 = vadd.f32 %v271, %v279
        %v288 = vadd.f32 %v272, %v280
        %v289 = vadd.f32 %v273, %v281
        %v290 = vadd.f32 %v274, %v282
        %v291 = vadd.f32 %v275, %v283
        %v292 = vadd.f32 %v276, %v284
        %v293 = vadd.f32 %v277, %v285
        %v294 = vld [vmem:[%s233] sm:$0xff]
        %v295 = vld [vmem:[%s233 + $0x8] sm:$0xff]
        %v296 = vld [vmem:[%s233 + $0x10] sm:$0xff]
        %v297 = vld [vmem:[%s233 + $0x18] sm:$0xff]
        %v298 = vld [vmem:[%s233 + $0x20] sm:$0xff]
        %v299 = vld [vmem:[%s233 + $0x28] sm:$0xff]
        %v300 = vld [vmem:[%s233 + $0x30] sm:$0xff]
        %v301 = vld [vmem:[%s233 + $0x38] sm:$0xff]
        %v302 = vadd.f32 %v286, %v294
        %v303 = vadd.f32 %v287, %v295
        %v304 = vadd.f32 %v288, %v296
        %v305 = vadd.f32 %v289, %v297
        %v306 = vadd.f32 %v290, %v298
        %v307 = vadd.f32 %v291, %v299
        %v308 = vadd.f32 %v292, %v300
        %v309 = vadd.f32 %v293, %v301
        %v310 = vmul.f32 %v270, %v278
        %v311 = vmul.f32 %v271, %v279
        %v312 = vmul.f32 %v272, %v280
        %v313 = vmul.f32 %v273, %v281
        %v314 = vmul.f32 %v274, %v282
        %v315 = vmul.f32 %v275, %v283
        %v316 = vmul.f32 %v276, %v284
        %v317 = vmul.f32 %v277, %v285
        %v318 = vmul.f32 %v310, %v294
        %v319 = vmul.f32 %v311, %v295
        %v320 = vmul.f32 %v312, %v296
        %v321 = vmul.f32 %v313, %v297
        %v322 = vmul.f32 %v314, %v298
        %v323 = vmul.f32 %v315, %v299
        %v324 = vmul.f32 %v316, %v300
        %v325 = vmul.f32 %v317, %v301
        %326 = vst [vmem:[%s265] sm:$0xff] %v318
        %327 = vst [vmem:[%s265 + $0x28] sm:$0xff] %v319
        %328 = vst [vmem:[%s265 + $0x50] sm:$0xff] %v320
        %329 = vst [vmem:[%s265 + $0x78] sm:$0xff] %v321
        %330 = vst [vmem:[%s265 + $0xa0] sm:$0xff] %v322
        %331 = vst [vmem:[%s265 + $0xc8] sm:$0xff] %v323
        %332 = vst [vmem:[%s265 + $0xf0] sm:$0xff] %v324
        %333 = vst [vmem:[%s265 + $0x118] sm:$0xff] %v325
        %334 = vst [vmem:[%s265 + $0x8] sm:$0xff] %v278
        %335 = vst [vmem:[%s265 + $0x30] sm:$0xff] %v279
        %336 = vst [vmem:[%s265 + $0x58] sm:$0xff] %v280
        %337 = vst [vmem:[%s265 + $0x80] sm:$0xff] %v281
        %338 = vst [vmem:[%s265 + $0xa8] sm:$0xff] %v282
        %339 = vst [vmem:[%s265 + $0xd0] sm:$0xff] %v283
        %340 = vst [vmem:[%s265 + $0xf8] sm:$0xff] %v284
        %341 = vst [vmem:[%s265 + $0x120] sm:$0xff] %v285
        %342 = vst [vmem:[%s265 + $0x10] sm:$0xff] %v294
        %343 = vst [vmem:[%s265 + $0x38] sm:$0xff] %v295
        %344 = vst [vmem:[%s265 + $0x60] sm:$0xff] %v296
        %345 = vst [vmem:[%s265 + $0x88] sm:$0xff] %v297
        %346 = vst [vmem:[%s265 + $0xb0] sm:$0xff] %v298
        %347 = vst [vmem:[%s265 + $0xd8] sm:$0xff] %v299
        %348 = vst [vmem:[%s265 + $0x100] sm:$0xff] %v300
        %349 = vst [vmem:[%s265 + $0x128] sm:$0xff] %v301
        %350 = vst [vmem:[%s265 + $0x18] sm:$0xff] %v302
        %351 = vst [vmem:[%s265 + $0x40] sm:$0xff] %v303
        %352 = vst [vmem:[%s265 + $0x68] sm:$0xff] %v304
        %353 = vst [vmem:[%s265 + $0x90] sm:$0xff] %v305
        %354 = vst [vmem:[%s265 + $0xb8] sm:$0xff] %v306
        %355 = vst [vmem:[%s265 + $0xe0] sm:$0xff] %v307
        %356 = vst [vmem:[%s265 + $0x108] sm:$0xff] %v308
        %357 = vst [vmem:[%s265 + $0x130] sm:$0xff] %v309
        %358 = vst [vmem:[%s265 + $0x20] sm:$0xff] %v318
        %359 = vst [vmem:[%s265 + $0x48] sm:$0xff] %v319
        %360 = vst [vmem:[%s265 + $0x70] sm:$0xff] %v320
        %361 = vst [vmem:[%s265 + $0x98] sm:$0xff] %v321
        %362 = vst [vmem:[%s265 + $0xc0] sm:$0xff] %v322
        %363 = vst [vmem:[%s265 + $0xe8] sm:$0xff] %v323
        %364 = vst [vmem:[%s265 + $0x110] sm:$0xff] %v324
        %365 = vst [vmem:[%s265 + $0x138] sm:$0xff] %v325
        %s366 = sand.u32 %s109, 1
        %s367 = scalar_lea.sflag [#allocation4], %s366
        %s368 = sand.u32 %s109, 1
        %s369 = smul.addr %s368, 320
        %s370 = scalar_lea.vmem [#allocation8], %s369
        // Predicated region
        $region45: #{tpu_custom_call.1} parent=31 // pred_check
          %p371 = pneg %p119
        $region46: #{tpu_custom_call.1} parent=31 // pred_check_branch
          %373 = sbr.rel (%p371) target = $region48
        $region47: #{tpu_custom_call.1} parent=31 // pred_region
          %s374 = smul.u32 8, %s23
          %s376 = ssub.s32 5120, 5120
          %377 = vsyncadd %s367, %s376
          %s378 = smul.addr %s374, 5
          %s379 = smul.addr %s378, 128
          %s380 = scalar_lea.hbm %s3, %s379
          %s381 = sshll.u32 %s370, 4
          %s382 = int_to_ptr.vmem [resolvable:$true] %s381
          %387 = dma.vmem_to_hbm [thread:$0]  %s382, 5120, %s380, %s367, 640, 640, 40
        $region48: #{tpu_custom_call.1} parent=31 // pred_fallthru
          _
      $region32: #{tpu_custom_call.1} parent=5 // pred_fallthru
        _
      %p388 = scmp.le.s32.totalorder 2, %s18
      // Predicated region
      $region49: #{tpu_custom_call.1} parent=5 // pred_check
        %p389 = pneg %p388
      $region50: #{tpu_custom_call.1} parent=5 // pred_check_branch
        %391 = sbr.rel (%p389) target = $region52
      $region51: #{tpu_custom_call.1} parent=5 // pred_region
        %s392 = ssub.s32 %s18, 2
        // Predicated region
        $region53: #{tpu_custom_call.1} parent=51 // pred_check
          %p393 = pneg %p125
        $region54: #{tpu_custom_call.1} parent=51 // pred_check_branch
          %395 = sbr.rel (%p393) target = $region56
        $region55: #{tpu_custom_call.1} parent=51 // pred_region
          %s396 = sand.u32 %s110, 1
          %s397 = scalar_lea.sflag [#allocation4], %s396
          %s398 = sand.u32 %s110, 1
          %s399 = smul.addr %s398, 320
          %s400 = scalar_lea.vmem [#allocation8], %s399
          %401 = dma.done %s397, 5120
        $region56: #{tpu_custom_call.1} parent=51 // pred_fallthru
          _
      $region52: #{tpu_custom_call.1} parent=5 // pred_fallthru
        _
    $region6: #{tpu_custom_call.1} parent=1 // loop_footer
      %s22 = sadd.s32 1, %s18
    $region7: #{tpu_custom_call.1} parent=1 // loop_footer_branch
      %17 = sbr.rel target = $region3
    $region8: #{tpu_custom_call.1} parent=1 // loop_exit
      _
    %402 = vsyncpa [#allocation3], 1
    %s403 = scalar_lea.sflag [#allocation3], 1
    %404 = vsyncpa %s403, 1
    %405 = vsyncpa [#allocation6], 1
    %s406 = scalar_lea.sflag [#allocation6], 1
    %407 = vsyncpa %s406, 1
    %408 = vsyncpa [#allocation4], 1
    %s409 = scalar_lea.sflag [#allocation4], 1
    %410 = vsyncpa %s409, 1

</llo_original>
